<compile_context>
chip_gen: v6e
topology: v6e:2x2x1
jax: 0.10.0
libtpu: 0.0.40
codegen_flags: <defaults>
</compile_context>

<pallas_src>
import jax
import jax.numpy as jnp
from jax.experimental import pallas as pl
from jax.experimental.pallas import tpu as pltpu


def _round_up(x, m):
    return (x + m - 1) // m * m


def rna_decoder_kernel(z_ref, w1_ref, b1_ref, w2_ref, b2_ref, o_ref, h_ref):
    # fc1 + ReLU runs once per batch tile; output-tile axis j is the inner axis.
    @pl.when(pl.program_id(1) == 0)
    def _():
        h = jnp.dot(z_ref[...], w1_ref[...], preferred_element_type=jnp.float32)
        h_ref[...] = jnp.maximum(h + b1_ref[...], 0.0)      # f32 bias + ReLU

    # fc2 on the current output tile (canonical contraction on the MXU, f32 acc).
    out = jnp.dot(h_ref[...].astype(w2_ref.dtype), w2_ref[...],
                  preferred_element_type=jnp.float32)
    o_ref[...] = (out + b2_ref[...]).astype(o_ref.dtype)     # single final downcast


def prepare_decoder_params(w1, b1, w2, b2, *, compute_dtype=None):
    """One-time parameter prep: pad, cast, transpose to [in, out] layout.

    PyTorch nn.Linear convention on input:
      w1: (hidden, latent), b1: (hidden,), w2: (output, hidden), b2: (output,)
    """
    hidden, latent = w1.shape
    output = w2.shape[0]
    cdt = jnp.dtype(w1.dtype) if compute_dtype is None else jnp.dtype(compute_dtype)

    hidden_p = _round_up(hidden, 128)
    output_p = _round_up(output, 128)

    # Transpose + zero-pad + cast happen here, once, not per forward call.
    w1_t = jnp.zeros((latent, hidden_p), cdt).at[:, :hidden].set(w1.T.astype(cdt))
    w2_t = jnp.zeros((hidden_p, output_p), cdt).at[:hidden, :output].set(w2.T.astype(cdt))
    b1_p = jnp.zeros((1, hidden_p), jnp.float32).at[0, :hidden].set(b1.astype(jnp.float32))
    b2_p = jnp.zeros((1, output_p), jnp.float32).at[0, :output].set(b2.astype(jnp.float32))

    return dict(w1=w1_t, b1=b1_p, w2=w2_t, b2=b2_p,
                latent=latent, hidden_p=hidden_p,
                output=output, output_p=output_p, compute_dtype=cdt)


def _forward(z_p, params, *, tb, tn, out_dtype, vmem_limit, single_buffer_weights):
    w1, b1, w2, b2 = params["w1"], params["b1"], params["w2"], params["b2"]
    latent = params["latent"]
    hidden_p = params["hidden_p"]
    output_p = params["output_p"]
    cdt = params["compute_dtype"]
    b_p = z_p.shape[0]
    nb, nj = b_p // tb, output_p // tn

    # Constant-index operands need only one VMEM buffer.
    const_kw = {"pipeline_mode": pl.Buffered(1)} if single_buffer_weights else {}
    # fc2 weight/bias have a constant index only when there is a single output tile.
    w2_kw = const_kw if nj == 1 else {}

    csize = jnp.dtype(cdt).itemsize
    flops = 2 * b_p * (latent * hidden_p + hidden_p * output_p)
    bytes_accessed = (z_p.size * csize + w1.size * csize + w2.size * csize
                      + (b1.size + b2.size) * 4
                      + b_p * output_p * jnp.dtype(out_dtype).itemsize)

    return pl.pallas_call(
        rna_decoder_kernel,
        out_shape=jax.ShapeDtypeStruct((b_p, output_p), out_dtype),
        grid_spec=pltpu.PrefetchScalarGridSpec(
            num_scalar_prefetch=0,
            grid=(nb, nj),
            in_specs=[
                # Activation tile marches over the batch axis (double-buffered).
                pl.BlockSpec((tb, latent), lambda i, j: (i, 0)),
                # VMEM-resident fc1 weight / bias (constant index).
                pl.BlockSpec((latent, hidden_p), lambda i, j: (0, 0), **const_kw),
                pl.BlockSpec((1, hidden_p), lambda i, j: (0, 0), **const_kw),
                # fc2 weight / bias streamed over output tiles.
                pl.BlockSpec((hidden_p, tn), lambda i, j: (0, j), **w2_kw),
                pl.BlockSpec((1, tn), lambda i, j: (0, j), **w2_kw),
            ],
            out_specs=pl.BlockSpec((tb, tn), lambda i, j: (i, j)),
            scratch_shapes=[pltpu.VMEM((tb, hidden_p), jnp.float32)],
        ),
        compiler_params=pltpu.CompilerParams(
            dimension_semantics=("parallel", "arbitrary"),
            vmem_limit_bytes=int(vmem_limit)),
        cost_estimate=pl.CostEstimate(flops=flops, transcendentals=0,
                                      bytes_accessed=bytes_accessed),
    )(z_p, w1, b1, w2, b2)


def rna_decoder(z, params, *, block_b=256, block_n=512):
    """Fused forward: relu(z @ W1^T + b1) @ W2^T + b2, with prepared params."""
    B, latent = z.shape
    assert latent == params["latent"], "latent dim mismatch"
    cdt = params["compute_dtype"]
    hidden_p = params["hidden_p"]
    output, output_p = params["output"], params["output_p"]

    # Batch tile: sublane pack is 16 rows for 16-bit compute, 8 for 32-bit.
    sub = 16 if jnp.dtype(cdt).itemsize == 2 else 8
    block_b = max(_round_up(block_b, sub), sub)
    tb = min(block_b, _round_up(B, sub))
    if B <= tb and B >= 2 * sub:
        # Expose >= 2 batch tiles so v7x's second TensorCore gets work.
        tb = _round_up(pl.cdiv(B, 2), sub)
    b_p = _round_up(B, tb)

    # Output tile: lane-dense multiple of 128 that divides output_p.
    block_n = max(_round_up(block_n, 128), 128)
    tn = min(block_n, output_p)
    while output_p % tn:
        tn -= 128
    nj = output_p // tn

    z_p = z.astype(cdt) if b_p == B else (
        jnp.zeros((b_p, latent), cdt).at[:B].set(z.astype(cdt)))

    # VMEM budget: weights (1x) + biases + 2x activation tile + 2x output tile
    # + f32 hidden scratch, with headroom, capped below device VMEM capacity.
    csize = jnp.dtype(cdt).itemsize
    osize = jnp.dtype(z.dtype).itemsize
    need = (latent * hidden_p * csize
            + hidden_p * tn * csize * (1 if nj == 1 else 2)
            + (hidden_p + tn) * 4
            + 2 * tb * latent * csize
            + 2 * tb * tn * osize
            + tb * hidden_p * 4)
    try:
        vmem_cap = int(pltpu.get_tpu_info().vmem_capacity_bytes)
    except Exception:
        vmem_cap = 64 << 20            # conservative: v7x per-TC VMEM
    vmem_limit = min(max(2 * need + (4 << 20), 32 << 20), vmem_cap - (8 << 20))

    try:
        out_p = _forward(z_p, params, tb=tb, tn=tn, out_dtype=z.dtype,
                         vmem_limit=vmem_limit, single_buffer_weights=True)
    except Exception:
        # Fallback for JAX versions without per-BlockSpec buffer-count control.
        out_p = _forward(z_p, params, tb=tb, tn=tn, out_dtype=z.dtype,
                         vmem_limit=vmem_limit, single_buffer_weights=False)

    if b_p == B and output_p == output:
        return out_p                   # no padded round-trip
    # TODO(synk): at realistic sizes, consume the padded (b_p, output_p) block
    # directly downstream instead of paying this slice-copy.
    return out_p[:B, :output]


if __name__ == "__main__":
    # Small shapes consistent with the module's forward.
    batch, latent_dim, hidden_dim, output_dim = 8, 16, 32, 24

    key = jax.random.PRNGKey(0)
    k_z, k_w1, k_b1, k_w2, k_b2, k_z2, k_w3, k_b3 = jax.random.split(key, 8)

    z = jax.random.normal(k_z, (batch, latent_dim), dtype=jnp.float32)
    # PyTorch nn.Linear layout: weight [out, in], bias [out].
    w1 = jax.random.normal(k_w1, (hidden_dim, latent_dim), dtype=jnp.float32) * 0.1
    b1 = jax.random.normal(k_b1, (hidden_dim,), dtype=jnp.float32) * 0.1
    w2 = jax.random.normal(k_w2, (output_dim, hidden_dim), dtype=jnp.float32) * 0.1
    b2 = jax.random.normal(k_b2, (output_dim,), dtype=jnp.float32) * 0.1

    def ref_fwd(zz, wa, ba, wb, bb):
        return jnp.maximum(zz @ wa.T + ba, 0.0) @ wb.T + bb

    # 1) f32 path: single batch tile, single output tile.
    params = prepare_decoder_params(w1, b1, w2, b2)
    out = rna_decoder(z, params)
    jax.block_until_ready(out)
    assert out.shape == (batch, output_dim)
    assert jnp.allclose(out, ref_fwd(z, w1, b1, w2, b2), atol=1e-5, rtol=1e-5)

    # 2) f32 path, multiple batch tiles (weights stay VMEM-resident across them).
    z_big = jax.random.normal(k_z2, (48, latent_dim), dtype=jnp.float32)
    out_big = rna_decoder(z_big, params, block_b=16)
    jax.block_until_ready(out_big)
    assert out_big.shape == (48, output_dim)
    assert jnp.allclose(out_big, ref_fwd(z_big, w1, b1, w2, b2), atol=1e-5, rtol=1e-5)

    # 3) Wider gene count -> multiple output tiles (fc2 weight streamed over j).
    wide_out = 300
    w3 = jax.random.normal(k_w3, (wide_out, hidden_dim), dtype=jnp.float32) * 0.1
    b3 = jax.random.normal(k_b3, (wide_out,), dtype=jnp.float32) * 0.1
    params_wide = prepare_decoder_params(w1, b1, w3, b3)
    out_wide = rna_decoder(z_big, params_wide, block_n=128)
    jax.block_until_ready(out_wide)
    assert out_wide.shape == (48, wide_out)
    assert jnp.allclose(out_wide, ref_fwd(z_big, w1, b1, w3, b3), atol=1e-5, rtol=1e-5)

    # 4) bf16 compute (MXU-friendly on v6e/v7x), f32 accumulate, loose tolerance.
    params_bf16 = prepare_decoder_params(w1, b1, w2, b2, compute_dtype=jnp.bfloat16)
    out_bf16 = rna_decoder(z, params_bf16)
    jax.block_until_ready(out_bf16)
    assert out_bf16.shape == (batch, output_dim)
    assert jnp.allclose(out_bf16, ref_fwd(z, w1, b1, w2, b2), atol=5e-2, rtol=5e-2)

    print("KERNEL_OK")
</pallas_src>

<mosaic_0001>
module attributes {stable_mosaic.version = 11 : i64} {
  func.func @rna_decoder_kernel(%arg0: i32, %arg1: i32, %arg2: memref<8x16xf32, #tpu.memory_space<vmem>>, %arg3: memref<16x128xf32, #tpu.memory_space<vmem>>, %arg4: memref<1x128xf32, #tpu.memory_space<vmem>>, %arg5: memref<128x128xf32, #tpu.memory_space<vmem>>, %arg6: memref<1x128xf32, #tpu.memory_space<vmem>>, %arg7: memref<8x128xf32, #tpu.memory_space<vmem>>, %arg8: memref<8x128xf32, #tpu.memory_space<vmem>>) attributes {dimension_semantics = [#tpu.dimension_semantics<parallel>, #tpu.dimension_semantics<arbitrary>], iteration_bounds = array<i64: 1, 1>, scalar_prefetch = 0 : i64, scratch_operands = 1 : i64, tpu.core_type = #tpu.core_type<tc>, window_params = [{transform_indices = @transform_0, window_bounds = array<i64: 8, 16>}, {pipeline_mode = #tpu.pipeline_mode<synchronous>, transform_indices = @transform_1, window_bounds = array<i64: 16, 128>}, {pipeline_mode = #tpu.pipeline_mode<synchronous>, transform_indices = @transform_2, window_bounds = array<i64: 1, 128>}, {pipeline_mode = #tpu.pipeline_mode<synchronous>, transform_indices = @transform_3, window_bounds = array<i64: 128, 128>}, {pipeline_mode = #tpu.pipeline_mode<synchronous>, transform_indices = @transform_4, window_bounds = array<i64: 1, 128>}, {transform_indices = @transform_5, window_bounds = array<i64: 8, 128>}]} {
    %c0_i32 = arith.constant 0 : i32
    %0 = arith.cmpi eq, %arg1, %c0_i32 : i32
    %1 = arith.extui %0 : i1 to i32
    %c0_i32_0 = arith.constant 0 : i32
    %2 = arith.cmpi ne, %1, %c0_i32_0 : i32
    scf.if %2 {
      %c0_8 = arith.constant 0 : index
      %c0_9 = arith.constant 0 : index
      %10 = vector.load %arg2[%c0_8, %c0_9] : memref<8x16xf32, #tpu.memory_space<vmem>>, vector<8x16xf32>
      %c0_10 = arith.constant 0 : index
      %c0_11 = arith.constant 0 : index
      %11 = vector.load %arg3[%c0_10, %c0_11] : memref<16x128xf32, #tpu.memory_space<vmem>>, vector<16x128xf32>
      %cst_12 = arith.constant dense<0.000000e+00> : vector<8x128xf32>
      %12 = tpu.matmul %10, %11, %cst_12 {dimension_numbers = #tpu.dot_dimension_numbers<[1], [0], [0], [1], [0, 0, 1, 1], [], []>} : vector<8x16xf32>, vector<16x128xf32>, vector<8x128xf32> -> vector<8x128xf32>
      %c0_13 = arith.constant 0 : index
      %c0_14 = arith.constant 0 : index
      %13 = vector.load %arg4[%c0_13, %c0_14] : memref<1x128xf32, #tpu.memory_space<vmem>>, vector<1x128xf32>
      %14 = vector.broadcast %13 : vector<1x128xf32> to vector<8x128xf32>
      %15 = arith.addf %12, %14 : vector<8x128xf32>
      %cst_15 = arith.constant 0.000000e+00 : f32
      %16 = vector.broadcast %cst_15 : f32 to vector<8x128xf32>
      %17 = arith.maximumf %15, %16 : vector<8x128xf32>
      %c0_16 = arith.constant 0 : index
      %c0_17 = arith.constant 0 : index
      %18 = vector.load %arg8[%c0_16, %c0_17] : memref<8x128xf32, #tpu.memory_space<vmem>>, vector<8x128xf32>
      tpu.vector_store %arg8[%c0_16, %c0_17], %17 {strides = array<i32>} : memref<8x128xf32, #tpu.memory_space<vmem>>, vector<8x128xf32>,
    } else {
    }
    %c0 = arith.constant 0 : index
    %c0_1 = arith.constant 0 : index
    %3 = vector.load %arg8[%c0, %c0_1] : memref<8x128xf32, #tpu.memory_space<vmem>>, vector<8x128xf32>
    %c0_2 = arith.constant 0 : index
    %c0_3 = arith.constant 0 : index
    %4 = vector.load %arg5[%c0_2, %c0_3] : memref<128x128xf32, #tpu.memory_space<vmem>>, vector<128x128xf32>
    %cst = arith.constant dense<0.000000e+00> : vector<8x128xf32>
    %5 = tpu.matmul %3, %4, %cst {dimension_numbers = #tpu.dot_dimension_numbers<[1], [0], [0], [1], [0, 0, 1, 1], [], []>} : vector<8x128xf32>, vector<128x128xf32>, vector<8x128xf32> -> vector<8x128xf32>
    %c0_4 = arith.constant 0 : index
    %c0_5 = arith.constant 0 : index
    %6 = vector.load %arg6[%c0_4, %c0_5] : memref<1x128xf32, #tpu.memory_space<vmem>>, vector<1x128xf32>
    %7 = vector.broadcast %6 : vector<1x128xf32> to vector<8x128xf32>
    %8 = arith.addf %5, %7 : vector<8x128xf32>
    %c0_6 = arith.constant 0 : index
    %c0_7 = arith.constant 0 : index
    %9 = vector.load %arg7[%c0_6, %c0_7] : memref<8x128xf32, #tpu.memory_space<vmem>>, vector<8x128xf32>
    tpu.vector_store %arg7[%c0_6, %c0_7], %8 {strides = array<i32>} : memref<8x128xf32, #tpu.memory_space<vmem>>, vector<8x128xf32>,
    return
  }
  func.func @transform_0(%arg0: i32, %arg1: i32) -> (i32, i32) {
    %c0_i32 = arith.constant 0 : i32
    %c0_i32_0 = arith.constant 0 : i32
    return %arg0, %c0_i32 : i32, i32
  }
  func.func @transform_1(%arg0: i32, %arg1: i32) -> (i32, i32) {
    %c0_i32 = arith.constant 0 : i32
    %c0_i32_0 = arith.constant 0 : i32
    %c0_i32_1 = arith.constant 0 : i32
    return %c0_i32, %c0_i32_0 : i32, i32
  }
  func.func @transform_2(%arg0: i32, %arg1: i32) -> (i32, i32) {
    %c0_i32 = arith.constant 0 : i32
    %c0_i32_0 = arith.constant 0 : i32
    %c0_i32_1 = arith.constant 0 : i32
    return %c0_i32, %c0_i32_0 : i32, i32
  }
  func.func @transform_3(%arg0: i32, %arg1: i32) -> (i32, i32) {
    %c0_i32 = arith.constant 0 : i32
    %c0_i32_0 = arith.constant 0 : i32
    return %c0_i32, %arg1 : i32, i32
  }
  func.func @transform_4(%arg0: i32, %arg1: i32) -> (i32, i32) {
    %c0_i32 = arith.constant 0 : i32
    %c0_i32_0 = arith.constant 0 : i32
    return %c0_i32, %arg1 : i32, i32
  }
  func.func @transform_5(%arg0: i32, %arg1: i32) -> (i32, i32) {
    %c0_i32 = arith.constant 0 : i32
    return %arg0, %arg1 : i32, i32
  }
}

module attributes {stable_mosaic.version = 11 : i64} {
  func.func @rna_decoder_kernel(%arg0: i32, %arg1: i32, %arg2: memref<8x16xf32, #tpu.memory_space<vmem>>, %arg3: memref<16x128xf32, #tpu.memory_space<vmem>>, %arg4: memref<1x128xf32, #tpu.memory_space<vmem>>, %arg5: memref<128x128xf32, #tpu.memory_space<vmem>>, %arg6: memref<1x128xf32, #tpu.memory_space<vmem>>, %arg7: memref<8x128xf32, #tpu.memory_space<vmem>>, %arg8: memref<8x128xf32, #tpu.memory_space<vmem>>) attributes {dimension_semantics = [#tpu.dimension_semantics<parallel>, #tpu.dimension_semantics<arbitrary>], iteration_bounds = array<i64: 1, 1>, scalar_prefetch = 0 : i64, scratch_operands = 1 : i64, tpu.core_type = #tpu.core_type<tc>, window_params = [{transform_indices = @transform_0, window_bounds = array<i64: 8, 16>}, {pipeline_mode = #tpu.pipeline_mode<synchronous>, transform_indices = @transform_1, window_bounds = array<i64: 16, 128>}, {pipeline_mode = #tpu.pipeline_mode<synchronous>, transform_indices = @transform_2, window_bounds = array<i64: 1, 128>}, {transform_indices = @transform_3, window_bounds = array<i64: 128, 128>}, {transform_indices = @transform_4, window_bounds = array<i64: 1, 128>}, {transform_indices = @transform_5, window_bounds = array<i64: 8, 128>}]} {
    %c0_i32 = arith.constant 0 : i32
    %0 = arith.cmpi eq, %arg1, %c0_i32 : i32
    %1 = arith.extui %0 : i1 to i32
    %c0_i32_0 = arith.constant 0 : i32
    %2 = arith.cmpi ne, %1, %c0_i32_0 : i32
    scf.if %2 {
      %c0_8 = arith.constant 0 : index
      %c0_9 = arith.constant 0 : index
      %10 = vector.load %arg2[%c0_8, %c0_9] : memref<8x16xf32, #tpu.memory_space<vmem>>, vector<8x16xf32>
      %c0_10 = arith.constant 0 : index
      %c0_11 = arith.constant 0 : index
      %11 = vector.load %arg3[%c0_10, %c0_11] : memref<16x128xf32, #tpu.memory_space<vmem>>, vector<16x128xf32>
      %cst_12 = arith.constant dense<0.000000e+00> : vector<8x128xf32>
      %12 = tpu.matmul %10, %11, %cst_12 {dimension_numbers = #tpu.dot_dimension_numbers<[1], [0], [0], [1], [0, 0, 1, 1], [], []>} : vector<8x16xf32>, vector<16x128xf32>, vector<8x128xf32> -> vector<8x128xf32>
      %c0_13 = arith.constant 0 : index
      %c0_14 = arith.constant 0 : index
      %13 = vector.load %arg4[%c0_13, %c0_14] : memref<1x128xf32, #tpu.memory_space<vmem>>, vector<1x128xf32>
      %14 = vector.broadcast %13 : vector<1x128xf32> to vector<8x128xf32>
      %15 = arith.addf %12, %14 : vector<8x128xf32>
      %cst_15 = arith.constant 0.000000e+00 : f32
      %16 = vector.broadcast %cst_15 : f32 to vector<8x128xf32>
      %17 = arith.maximumf %15, %16 : vector<8x128xf32>
      %c0_16 = arith.constant 0 : index
      %c0_17 = arith.constant 0 : index
      %18 = vector.load %arg8[%c0_16, %c0_17] : memref<8x128xf32, #tpu.memory_space<vmem>>, vector<8x128xf32>
      tpu.vector_store %arg8[%c0_16, %c0_17], %17 {strides = array<i32>} : memref<8x128xf32, #tpu.memory_space<vmem>>, vector<8x128xf32>,
    } else {
    }
    %c0 = arith.constant 0 : index
    %c0_1 = arith.constant 0 : index
    %3 = vector.load %arg8[%c0, %c0_1] : memref<8x128xf32, #tpu.memory_space<vmem>>, vector<8x128xf32>
    %c0_2 = arith.constant 0 : index
    %c0_3 = arith.constant 0 : index
    %4 = vector.load %arg5[%c0_2, %c0_3] : memref<128x128xf32, #tpu.memory_space<vmem>>, vector<128x128xf32>
    %cst = arith.constant dense<0.000000e+00> : vector<8x128xf32>
    %5 = tpu.matmul %3, %4, %cst {dimension_numbers = #tpu.dot_dimension_numbers<[1], [0], [0], [1], [0, 0, 1, 1], [], []>} : vector<8x128xf32>, vector<128x128xf32>, vector<8x128xf32> -> vector<8x128xf32>
    %c0_4 = arith.constant 0 : index
    %c0_5 = arith.constant 0 : index
    %6 = vector.load %arg6[%c0_4, %c0_5] : memref<1x128xf32, #tpu.memory_space<vmem>>, vector<1x128xf32>
    %7 = vector.broadcast %6 : vector<1x128xf32> to vector<8x128xf32>
    %8 = arith.addf %5, %7 : vector<8x128xf32>
    %c0_6 = arith.constant 0 : index
    %c0_7 = arith.constant 0 : index
    %9 = vector.load %arg7[%c0_6, %c0_7] : memref<8x128xf32, #tpu.memory_space<vmem>>, vector<8x128xf32>
    tpu.vector_store %arg7[%c0_6, %c0_7], %8 {strides = array<i32>} : memref<8x128xf32, #tpu.memory_space<vmem>>, vector<8x128xf32>,
    return
  }
  func.func @transform_0(%arg0: i32, %arg1: i32) -> (i32, i32) {
    %c0_i32 = arith.constant 0 : i32
    %c0_i32_0 = arith.constant 0 : i32
    return %arg0, %c0_i32 : i32, i32
  }
  func.func @transform_1(%arg0: i32, %arg1: i32) -> (i32, i32) {
    %c0_i32 = arith.constant 0 : i32
    %c0_i32_0 = arith.constant 0 : i32
    %c0_i32_1 = arith.constant 0 : i32
    return %c0_i32, %c0_i32_0 : i32, i32
  }
  func.func @transform_2(%arg0: i32, %arg1: i32) -> (i32, i32) {
    %c0_i32 = arith.constant 0 : i32
    %c0_i32_0 = arith.constant 0 : i32
    %c0_i32_1 = arith.constant 0 : i32
    return %c0_i32, %c0_i32_0 : i32, i32
  }
  func.func @transform_3(%arg0: i32, %arg1: i32) -> (i32, i32) {
    %c0_i32 = arith.constant 0 : i32
    %c0_i32_0 = arith.constant 0 : i32
    return %c0_i32, %arg1 : i32, i32
  }
  func.func @transform_4(%arg0: i32, %arg1: i32) -> (i32, i32) {
    %c0_i32 = arith.constant 0 : i32
    %c0_i32_0 = arith.constant 0 : i32
    return %c0_i32, %arg1 : i32, i32
  }
  func.func @transform_5(%arg0: i32, %arg1: i32) -> (i32, i32) {
    %c0_i32 = arith.constant 0 : i32
    return %arg0, %arg1 : i32, i32
  }
}

</mosaic_0001>

<llo_original>
// kernel: tpu_custom_call.1
$region0: #{tpu_custom_call.1}
  #allocation0 [shape = 'u32[]', space=smem, size = 0x4, offset = 0x4, fixed_abs, tag = 'smem constant byte address 0x4 - core index']
  #allocation1 [shape = 'u32[144,128]{1,0:T(1,128)}', space=vmem, size = 0x12000, scoped, tag = 'internal scratch']
  #allocation2 [shape = 'f32[8,128]{1,0:T(8,128)}', space=vmem, size = 0x1000, scoped, tag = 'scratch operand']
  %s0 = inlined_call_operand.hbm [shape: f32[8,16], index: 0, kind: input, shape index: {}]
  %s1 = inlined_call_operand.hbm [shape: f32[16,128], index: 1, kind: input, shape index: {}]
  %s2 = inlined_call_operand.vmem [shape: f32[1,128], index: 2, kind: input, shape index: {}]
  %s3 = inlined_call_operand.hbm [shape: f32[128,128], index: 3, kind: input, shape index: {}]
  %s4 = inlined_call_operand.vmem [shape: f32[1,128], index: 4, kind: input, shape index: {}]
  %s5 = inlined_call_operand.hbm [shape: f32[8,128], index: 5, kind: output, shape index: {}]
  %s6 = sld [smem:[#allocation0]]
  $region46: #{tpu_custom_call.1} parent=0
    _
  %s8 = ssub.s32 1, %s6
  %s9 = scalar_select 0, %s8, %s6
  $region1: #{tpu_custom_call.1} parent=0
    #allocation3 [shape = 'u8[4096]{0}', space=vmem, size = 0x1000, scoped, tag = 'input window, operand 0, single buffered']
    #allocation4 [shape = 's32[1]{0}', space=sflag, size = 0x4, scoped, tag = 'scoped memory for tpu_custom_call.1']
    #allocation5 [shape = 's32[1]{0}', space=sflag, size = 0x4, scoped, tag = 'scoped memory for tpu_custom_call.1']
    #allocation6 [shape = 'u8[8192]{0}', space=vmem, size = 0x2000, scoped, tag = 'input window, operand 1, single buffered']
    #allocation7 [shape = 's32[1]{0}', space=sflag, size = 0x4, scoped, tag = 'scoped memory for tpu_custom_call.1']
    #allocation8 [shape = 'u8[65536]{0}', space=vmem, size = 0x10000, scoped, tag = 'input window, operand 3, single buffered']
    #allocation9 [shape = 'u8[4096]{0}', space=vmem, size = 0x1000, scoped, tag = 'output window, operand 0, single buffered']
    %10 = vsyncpa [#allocation4], 0
    %11 = vsyncpa [#allocation7], 0
    %12 = vsyncpa [#allocation5], 0
    // Predicated region
    $region2: #{tpu_custom_call.1} parent=1 // pred_check
      _
    $region3: #{tpu_custom_call.1} parent=1 // pred_check_branch
      %14 = sbr.rel (0) target = $region5
    $region4: #{tpu_custom_call.1} parent=1 // pred_region
      %s16 = ssub.s32 128, 128
      %17 = vsyncadd [#allocation4], %s16
      %s19 = sshll.u32 [#allocation3], 4
      %s20 = int_to_ptr.vmem [resolvable:$true] %s19
      %22 = dma.hbm_to_vmem [thread:$0]  %s0, 128, %s20, [#allocation4]
    $region5: #{tpu_custom_call.1} parent=1 // pred_fallthru
      _
    // Predicated region
    $region6: #{tpu_custom_call.1} parent=1 // pred_check
      _
    $region7: #{tpu_custom_call.1} parent=1 // pred_check_branch
      %24 = sbr.rel (0) target = $region9
    $region8: #{tpu_custom_call.1} parent=1 // pred_region
      %s26 = ssub.s32 256, 256
      %27 = vsyncadd [#allocation7], %s26
      %s28 = sshll.u32 [#allocation6], 4
      %s29 = int_to_ptr.vmem [resolvable:$true] %s28
      %34 = dma.hbm_to_vmem [thread:$0]  %s1, 256, %s29, [#allocation7], 128, 128, 8
    $region9: #{tpu_custom_call.1} parent=1 // pred_fallthru
      _
    // Predicated region
    $region10: #{tpu_custom_call.1} parent=1 // pred_check
      _
    $region11: #{tpu_custom_call.1} parent=1 // pred_check_branch
      %36 = sbr.rel (0) target = $region13
    $region12: #{tpu_custom_call.1} parent=1 // pred_region
      _
    $region13: #{tpu_custom_call.1} parent=1 // pred_fallthru
      _
    // Predicated region
    $region14: #{tpu_custom_call.1} parent=1 // pred_check
      _
    $region15: #{tpu_custom_call.1} parent=1 // pred_check_branch
      %38 = sbr.rel (0) target = $region17
    $region16: #{tpu_custom_call.1} parent=1 // pred_region
      %s40 = ssub.s32 2048, 2048
      %41 = vsyncadd [#allocation7], %s40
      %s42 = sshll.u32 [#allocation8], 4
      %s43 = int_to_ptr.vmem [resolvable:$true] %s42
      %48 = dma.hbm_to_vmem [thread:$0]  %s3, 2048, %s43, [#allocation7], 128, 128, 8
    $region17: #{tpu_custom_call.1} parent=1 // pred_fallthru
      _
    // Predicated region
    $region18: #{tpu_custom_call.1} parent=1 // pred_check
      _
    $region19: #{tpu_custom_call.1} parent=1 // pred_check_branch
      %50 = sbr.rel (0) target = $region21
    $region20: #{tpu_custom_call.1} parent=1 // pred_region
      _
    $region21: #{tpu_custom_call.1} parent=1 // pred_fallthru
      _
    // Predicated region
    $region22: #{tpu_custom_call.1} parent=1 // pred_check
      _
    $region23: #{tpu_custom_call.1} parent=1 // pred_check_branch
      %52 = sbr.rel (0) target = $region25
    $region24: #{tpu_custom_call.1} parent=1 // pred_region
      %53 = dma.done [#allocation4], 128
    $region25: #{tpu_custom_call.1} parent=1 // pred_fallthru
      _
    // Predicated region
    $region26: #{tpu_custom_call.1} parent=1 // pred_check
      _
    $region27: #{tpu_custom_call.1} parent=1 // pred_check_branch
      %55 = sbr.rel (0) target = $region29
    $region28: #{tpu_custom_call.1} parent=1 // pred_region
      %56 = dma.done [#allocation7], 256
    $region29: #{tpu_custom_call.1} parent=1 // pred_fallthru
      _
    // Predicated region
    $region30: #{tpu_custom_call.1} parent=1 // pred_check
      _
    $region31: #{tpu_custom_call.1} parent=1 // pred_check_branch
      %58 = sbr.rel (0) target = $region33
    $region32: #{tpu_custom_call.1} parent=1 // pred_region
      %59 = dma.done [#allocation7], 2048
    $region33: #{tpu_custom_call.1} parent=1 // pred_fallthru
      _
    %p60 = scmp.eq.s32.totalorder 0, 0
    // Predicated region
    $region34: #{tpu_custom_call.1} parent=1 // pred_check
      %p61 = pneg %p60
    $region35: #{tpu_custom_call.1} parent=1 // pred_check_branch
      %63 = sbr.rel (%p61) target = $region37
    $region36: #{tpu_custom_call.1} parent=1 // pred_region
      %v64 = vld [vmem:[#allocation3] sm:$0xff]
      %v65 = vld [vmem:[#allocation6] sm:$0xff]
      %v66 = vld [vmem:[#allocation6 + $0x8] sm:$0xff]
      %v67 = vld [vmem:[%s2] sm:$0x1]
      %v69 = vlaneseq
      %v70 = vshrl.u32 %v69, 7
      %v71 = vsub.s32 0, %v70
      %v72 = vrot.slane %v67, %v71
      %vm74 = vcmask 130048
      %v76 = vsel %vm74, %v64, 0
      %78 = vmatprep.subr.mxu0 0.0
      %79 = vmatpush1.msra.mxu0 0.0
      %80 = vmatprep.subr.mxu0 0.0
      %81 = vmatpush1.msra.mxu0 0.0
      %82 = vmatprep.subr.mxu0 0.0
      %83 = vmatpush1.msra.mxu0 0.0
      %84 = vmatprep.subr.mxu0 0.0
      %85 = vmatpush1.msra.mxu0 0.0
      %86 = vmatprep.subr.mxu0 0.0
      %87 = vmatpush1.msra.mxu0 0.0
      %88 = vmatprep.subr.mxu0 0.0
      %89 = vmatpush1.msra.mxu0 0.0
      %90 = vmatprep.subr.mxu0 0.0
      %91 = vmatpush1.msra.mxu0 0.0
      %92 = vmatprep.subr.mxu0 0.0
      %93 = vmatpush1.msra.mxu0 0.0
      %94 = vmatprep.subr.mxu0 0.0
      %95 = vmatpush1.msra.mxu0 0.0
      %96 = vmatprep.subr.mxu0 0.0
      %97 = vmatpush1.msra.mxu0 0.0
      %98 = vmatprep.subr.mxu0 0.0
      %99 = vmatpush1.msra.mxu0 0.0
      %100 = vmatprep.subr.mxu0 0.0
      %101 = vmatpush1.msra.mxu0 0.0
      %102 = vmatprep.subr.mxu0 0.0
      %103 = vmatpush1.msra.mxu0 0.0
      %104 = vmatprep.subr.mxu0 0.0
      %105 = vmatpush1.msra.mxu0 0.0
      %106 = vmatprep.subr.mxu0 0.0
      %107 = vmatpush1.msra.mxu0 %v66
      %108 = vmatprep.subr.mxu0 0.0
      %109 = vmatpush1.msra.mxu0 %v65
      %110 = vmatprep.subr.mxu0 0.0
      %111 = vmatpush2.msra.mxu0 0.0
      %112 = vmatprep.subr.mxu0 0.0
      %113 = vmatpush2.msra.mxu0 0.0
      %114 = vmatprep.subr.mxu0 0.0
      %115 = vmatpush2.msra.mxu0 0.0
      %116 = vmatprep.subr.mxu0 0.0
      %117 = vmatpush2.msra.mxu0 0.0
      %118 = vmatprep.subr.mxu0 0.0
      %119 = vmatpush2.msra.mxu0 0.0
      %120 = vmatprep.subr.mxu0 0.0
      %121 = vmatpush2.msra.mxu0 0.0
      %122 = vmatprep.subr.mxu0 0.0
      %123 = vmatpush2.msra.mxu0 0.0
      %124 = vmatprep.subr.mxu0 0.0
      %125 = vmatpush2.msra.mxu0 0.0
      %126 = vmatprep.subr.mxu0 0.0
      %127 = vmatpush2.msra.mxu0 0.0
      %128 = vmatprep.subr.mxu0 0.0
      %129 = vmatpush2.msra.mxu0 0.0
      %130 = vmatprep.subr.mxu0 0.0
      %131 = vmatpush2.msra.mxu0 0.0
      %132 = vmatprep.subr.mxu0 0.0
      %133 = vmatpush2.msra.mxu0 0.0
      %134 = vmatprep.subr.mxu0 0.0
      %135 = vmatpush2.msra.mxu0 0.0
      %136 = vmatprep.subr.mxu0 0.0
      %137 = vmatpush2.msra.mxu0 0.0
      %138 = vmatprep.subr.mxu0 0.0
      %139 = vmatpush2.msra.mxu0 0.0
      %140 = vmatprep.subr.mxu0 0.0
      %141 = vmatpush2.msra.mxu0 0.0
      %142 = vmatprep.mubr.f32.mxu0 0.0
      %143 = vmatmul.mubr.f32.gmra.mxu0 %v76
      %v144 = vpop.f32.mrf.mxu0
      %v145 = vadd.f32 %v72, %v144
      %v146 = vpop.f32.mrf.mxu0
      %147 = vdwg.mxu0
      %v148 = vmax.f32 %v145, 0.0
      %149 = vst [vmem:[#allocation2] sm:$0xff] %v148
    $region37: #{tpu_custom_call.1} parent=1 // pred_fallthru
      _
    %v150 = vld [vmem:[#allocation2] sm:$0xff]
    %v151 = vld [vmem:[#allocation8] sm:$0xff]
    %v152 = vld [vmem:[#allocation8 + $0x8] sm:$0xff]
    %v153 = vld [vmem:[#allocation8 + $0x10] sm:$0xff]
    %v154 = vld [vmem:[#allocation8 + $0x18] sm:$0xff]
    %v155 = vld [vmem:[#allocation8 + $0x20] sm:$0xff]
    %v156 = vld [vmem:[#allocation8 + $0x28] sm:$0xff]
    %v157 = vld [vmem:[#allocation8 + $0x30] sm:$0xff]
    %v158 = vld [vmem:[#allocation8 + $0x38] sm:$0xff]
    %v159 = vld [vmem:[#allocation8 + $0x40] sm:$0xff]
    %v160 = vld [vmem:[#allocation8 + $0x48] sm:$0xff]
    %v161 = vld [vmem:[#allocation8 + $0x50] sm:$0xff]
    %v162 = vld [vmem:[#allocation8 + $0x58] sm:$0xff]
    %v163 = vld [vmem:[#allocation8 + $0x60] sm:$0xff]
    %v164 = vld [vmem:[#allocation8 + $0x68] sm:$0xff]
    %v165 = vld [vmem:[#allocation8 + $0x70] sm:$0xff]
    %v166 = vld [vmem:[#allocation8 + $0x78] sm:$0xff]
    %v167 = vld [vmem:[%s4] sm:$0x1]
    %v169 = vlaneseq
    %v170 = vshrl.u32 %v169, 7
    %v171 = vsub.s32 0, %v170
    %v172 = vrot.slane %v167, %v171
    %174 = vmatprep.subr.mxu0 0.0
    %175 = vmatpush1.msra.mxu0 %v166
    %176 = vmatprep.subr.mxu0 0.0
    %177 = vmatpush1.msra.mxu0 %v165
    %178 = vmatprep.subr.mxu0 0.0
    %179 = vmatpush1.msra.mxu0 %v164
    %180 = vmatprep.subr.mxu0 0.0
    %181 = vmatpush1.msra.mxu0 %v163
    %182 = vmatprep.subr.mxu0 0.0
    %183 = vmatpush1.msra.mxu0 %v162
    %184 = vmatprep.subr.mxu0 0.0
    %185 = vmatpush1.msra.mxu0 %v161
    %186 = vmatprep.subr.mxu0 0.0
    %187 = vmatpush1.msra.mxu0 %v160
    %188 = vmatprep.subr.mxu0 0.0
    %189 = vmatpush1.msra.mxu0 %v159
    %190 = vmatprep.subr.mxu0 0.0
    %191 = vmatpush1.msra.mxu0 %v158
    %192 = vmatprep.subr.mxu0 0.0
    %193 = vmatpush1.msra.mxu0 %v157
    %194 = vmatprep.subr.mxu0 0.0
    %195 = vmatpush1.msra.mxu0 %v156
    %196 = vmatprep.subr.mxu0 0.0
    %197 = vmatpush1.msra.mxu0 %v155
    %198 = vmatprep.subr.mxu0 0.0
    %199 = vmatpush1.msra.mxu0 %v154
    %200 = vmatprep.subr.mxu0 0.0
    %201 = vmatpush1.msra.mxu0 %v153
    %202 = vmatprep.subr.mxu0 0.0
    %203 = vmatpush1.msra.mxu0 %v152
    %204 = vmatprep.subr.mxu0 0.0
    %205 = vmatpush1.msra.mxu0 %v151
    %206 = vmatprep.subr.mxu0 0.0
    %207 = vmatpush2.msra.mxu0 0.0
    %208 = vmatprep.subr.mxu0 0.0
    %209 = vmatpush2.msra.mxu0 0.0
    %210 = vmatprep.subr.mxu0 0.0
    %211 = vmatpush2.msra.mxu0 0.0
    %212 = vmatprep.subr.mxu0 0.0
    %213 = vmatpush2.msra.mxu0 0.0
    %214 = vmatprep.subr.mxu0 0.0
    %215 = vmatpush2.msra.mxu0 0.0
    %216 = vmatprep.subr.mxu0 0.0
    %217 = vmatpush2.msra.mxu0 0.0
    %218 = vmatprep.subr.mxu0 0.0
    %219 = vmatpush2.msra.mxu0 0.0
    %220 = vmatprep.subr.mxu0 0.0
    %221 = vmatpush2.msra.mxu0 0.0
    %222 = vmatprep.subr.mxu0 0.0
    %223 = vmatpush2.msra.mxu0 0.0
    %224 = vmatprep.subr.mxu0 0.0
    %225 = vmatpush2.msra.mxu0 0.0
    %226 = vmatprep.subr.mxu0 0.0
    %227 = vmatpush2.msra.mxu0 0.0
    %228 = vmatprep.subr.mxu0 0.0
    %229 = vmatpush2.msra.mxu0 0.0
    %230 = vmatprep.subr.mxu0 0.0
    %231 = vmatpush2.msra.mxu0 0.0
    %232 = vmatprep.subr.mxu0 0.0
    %233 = vmatpush2.msra.mxu0 0.0
    %234 = vmatprep.subr.mxu0 0.0
    %235 = vmatpush2.msra.mxu0 0.0
    %236 = vmatprep.subr.mxu0 0.0
    %237 = vmatpush2.msra.mxu0 0.0
    %238 = vmatprep.mubr.f32.mxu0 0.0
    %239 = vmatmul.mubr.f32.gmra.mxu0 %v150
    %v240 = vpop.f32.mrf.mxu0
    %v241 = vadd.f32 %v172, %v240
    %v242 = vpop.f32.mrf.mxu0
    %243 = vdwg.mxu0
    %244 = vst [vmem:[#allocation9] sm:$0xff] %v241
    // Predicated region
    $region38: #{tpu_custom_call.1} parent=1 // pred_check
      _
    $region39: #{tpu_custom_call.1} parent=1 // pred_check_branch
      %246 = sbr.rel (0) target = $region41
    $region40: #{tpu_custom_call.1} parent=1 // pred_region
      %s248 = ssub.s32 128, 128
      %249 = vsyncadd [#allocation5], %s248
      %s251 = sshll.u32 [#allocation9], 4
      %s252 = int_to_ptr.vmem [resolvable:$true] %s251
      %254 = dma.vmem_to_hbm [thread:$0]  %s252, 128, %s5, [#allocation5]
    $region41: #{tpu_custom_call.1} parent=1 // pred_fallthru
      _
    // Predicated region
    $region42: #{tpu_custom_call.1} parent=1 // pred_check
      _
    $region43: #{tpu_custom_call.1} parent=1 // pred_check_branch
      %256 = sbr.rel (0) target = $region45
    $region44: #{tpu_custom_call.1} parent=1 // pred_region
      %257 = dma.done [#allocation5], 128
    $region45: #{tpu_custom_call.1} parent=1 // pred_fallthru
      _
    %258 = vsyncpa [#allocation4], 1
    %259 = vsyncpa [#allocation7], 1
    %260 = vsyncpa [#allocation5], 1

// kernel: tpu_custom_call.1
$region0: #{tpu_custom_call.1}
  #allocation0 [shape = 'u32[]', space=smem, size = 0x4, offset = 0x4, fixed_abs, tag = 'smem constant byte address 0x4 - core index']
  #allocation1 [shape = 'u32[144,128]{1,0:T(1,128)}', space=vmem, size = 0x12000, scoped, tag = 'internal scratch']
  #allocation2 [shape = 'f32[8,128]{1,0:T(8,128)}', space=vmem, size = 0x1000, scoped, tag = 'scratch operand']
  %s0 = inlined_call_operand.hbm [shape: f32[8,16], index: 0, kind: input, shape index: {}]
  %s1 = inlined_call_operand.hbm [shape: f32[16,128], index: 1, kind: input, shape index: {}]
  %s2 = inlined_call_operand.vmem [shape: f32[1,128], index: 2, kind: input, shape index: {}]
  %s3 = inlined_call_operand.hbm [shape: f32[128,128], index: 3, kind: input, shape index: {}]
  %s4 = inlined_call_operand.vmem [shape: f32[1,128], index: 4, kind: input, shape index: {}]
  %s5 = inlined_call_operand.hbm [shape: f32[8,128], index: 5, kind: output, shape index: {}]
  %s6 = sld [smem:[#allocation0]]
  $region46: #{tpu_custom_call.1} parent=0
    _
  %s8 = ssub.s32 1, %s6
  %s9 = scalar_select 0, %s8, %s6
  $region1: #{tpu_custom_call.1} parent=0
    #allocation3 [shape = 'u8[4096]{0}', space=vmem, size = 0x1000, scoped, tag = 'input window, operand 0, single buffered']
    #allocation4 [shape = 's32[1]{0}', space=sflag, size = 0x4, scoped, tag = 'scoped memory for tpu_custom_call.1']
    #allocation5 [shape = 's32[1]{0}', space=sflag, size = 0x4, scoped, tag = 'scoped memory for tpu_custom_call.1']
    #allocation6 [shape = 'u8[8192]{0}', space=vmem, size = 0x2000, scoped, tag = 'input window, operand 1, single buffered']
    #allocation7 [shape = 's32[1]{0}', space=sflag, size = 0x4, scoped, tag = 'scoped memory for tpu_custom_call.1']
    #allocation8 [shape = 'u8[65536]{0}', space=vmem, size = 0x10000, scoped, tag = 'input window, operand 3, single buffered']
    #allocation9 [shape = 'u8[4096]{0}', space=vmem, size = 0x1000, scoped, tag = 'output window, operand 0, single buffered']
    %10 = vsyncpa [#allocation4], 0
    %11 = vsyncpa [#allocation7], 0
    %12 = vsyncpa [#allocation5], 0
    // Predicated region
    $region2: #{tpu_custom_call.1} parent=1 // pred_check
      _
    $region3: #{tpu_custom_call.1} parent=1 // pred_check_branch
      %14 = sbr.rel (0) target = $region5
    $region4: #{tpu_custom_call.1} parent=1 // pred_region
      %s16 = ssub.s32 128, 128
      %17 = vsyncadd [#allocation4], %s16
      %s19 = sshll.u32 [#allocation3], 4
      %s20 = int_to_ptr.vmem [resolvable:$true] %s19
      %22 = dma.hbm_to_vmem [thread:$0]  %s0, 128, %s20, [#allocation4]
    $region5: #{tpu_custom_call.1} parent=1 // pred_fallthru
      _
    // Predicated region
    $region6: #{tpu_custom_call.1} parent=1 // pred_check
      _
    $region7: #{tpu_custom_call.1} parent=1 // pred_check_branch
      %24 = sbr.rel (0) target = $region9
    $region8: #{tpu_custom_call.1} parent=1 // pred_region
      %s26 = ssub.s32 256, 256
      %27 = vsyncadd [#allocation7], %s26
      %s28 = sshll.u32 [#allocation6], 4
      %s29 = int_to_ptr.vmem [resolvable:$true] %s28
      %34 = dma.hbm_to_vmem [thread:$0]  %s1, 256, %s29, [#allocation7], 128, 128, 8
    $region9: #{tpu_custom_call.1} parent=1 // pred_fallthru
      _
    // Predicated region
    $region10: #{tpu_custom_call.1} parent=1 // pred_check
      _
    $region11: #{tpu_custom_call.1} parent=1 // pred_check_branch
      %36 = sbr.rel (0) target = $region13
    $region12: #{tpu_custom_call.1} parent=1 // pred_region
      _
    $region13: #{tpu_custom_call.1} parent=1 // pred_fallthru
      _
    // Predicated region
    $region14: #{tpu_custom_call.1} parent=1 // pred_check
      _
    $region15: #{tpu_custom_call.1} parent=1 // pred_check_branch
      %38 = sbr.rel (0) target = $region17
    $region16: #{tpu_custom_call.1} parent=1 // pred_region
      %s40 = ssub.s32 2048, 2048
      %41 = vsyncadd [#allocation7], %s40
      %s42 = sshll.u32 [#allocation8], 4
      %s43 = int_to_ptr.vmem [resolvable:$true] %s42
      %48 = dma.hbm_to_vmem [thread:$0]  %s3, 2048, %s43, [#allocation7], 128, 128, 8
    $region17: #{tpu_custom_call.1} parent=1 // pred_fallthru
      _
    // Predicated region
    $region18: #{tpu_custom_call.1} parent=1 // pred_check
      _
    $region19: #{tpu_custom_call.1} parent=1 // pred_check_branch
      %50 = sbr.rel (0) target = $region21
    $region20: #{tpu_custom_call.1} parent=1 // pred_region
      _
    $region21: #{tpu_custom_call.1} parent=1 // pred_fallthru
      _
    // Predicated region
    $region22: #{tpu_custom_call.1} parent=1 // pred_check
      _
    $region23: #{tpu_custom_call.1} parent=1 // pred_check_branch
      %52 = sbr.rel (0) target = $region25
    $region24: #{tpu_custom_call.1} parent=1 // pred_region
      %53 = dma.done [#allocation4], 128
    $region25: #{tpu_custom_call.1} parent=1 // pred_fallthru
      _
    // Predicated region
    $region26: #{tpu_custom_call.1} parent=1 // pred_check
      _
    $region27: #{tpu_custom_call.1} parent=1 // pred_check_branch
      %55 = sbr.rel (0) target = $region29
    $region28: #{tpu_custom_call.1} parent=1 // pred_region
      %56 = dma.done [#allocation7], 256
    $region29: #{tpu_custom_call.1} parent=1 // pred_fallthru
      _
    // Predicated region
    $region30: #{tpu_custom_call.1} parent=1 // pred_check
      _
    $region31: #{tpu_custom_call.1} parent=1 // pred_check_branch
      %58 = sbr.rel (0) target = $region33
    $region32: #{tpu_custom_call.1} parent=1 // pred_region
      %59 = dma.done [#allocation7], 2048
    $region33: #{tpu_custom_call.1} parent=1 // pred_fallthru
      _
    %p60 = scmp.eq.s32.totalorder 0, 0
    // Predicated region
    $region34: #{tpu_custom_call.1} parent=1 // pred_check
      %p61 = pneg %p60
    $region35: #{tpu_custom_call.1} parent=1 // pred_check_branch
      %63 = sbr.rel (%p61) target = $region37
    $region36: #{tpu_custom_call.1} parent=1 // pred_region
      %v64 = vld [vmem:[#allocation3] sm:$0xff]
      %v65 = vld [vmem:[#allocation6] sm:$0xff]
      %v66 = vld [vmem:[#allocation6 + $0x8] sm:$0xff]
      %v67 = vld [vmem:[%s2] sm:$0x1]
      %v69 = vlaneseq
      %v70 = vshrl.u32 %v69, 7
      %v71 = vsub.s32 0, %v70
      %v72 = vrot.slane %v67, %v71
      %vm74 = vcmask 130048
      %v76 = vsel %vm74, %v64, 0
      %78 = vmatprep.subr.mxu0 0.0
      %79 = vmatpush1.msra.mxu0 0.0
      %80 = vmatprep.subr.mxu0 0.0
      %81 = vmatpush1.msra.mxu0 0.0
      %82 = vmatprep.subr.mxu0 0.0
      %83 = vmatpush1.msra.mxu0 0.0
      %84 = vmatprep.subr.mxu0 0.0
      %85 = vmatpush1.msra.mxu0 0.0
      %86 = vmatprep.subr.mxu0 0.0
      %87 = vmatpush1.msra.mxu0 0.0
      %88 = vmatprep.subr.mxu0 0.0
      %89 = vmatpush1.msra.mxu0 0.0
      %90 = vmatprep.subr.mxu0 0.0
      %91 = vmatpush1.msra.mxu0 0.0
      %92 = vmatprep.subr.mxu0 0.0
      %93 = vmatpush1.msra.mxu0 0.0
      %94 = vmatprep.subr.mxu0 0.0
      %95 = vmatpush1.msra.mxu0 0.0
      %96 = vmatprep.subr.mxu0 0.0
      %97 = vmatpush1.msra.mxu0 0.0
      %98 = vmatprep.subr.mxu0 0.0
      %99 = vmatpush1.msra.mxu0 0.0
      %100 = vmatprep.subr.mxu0 0.0
      %101 = vmatpush1.msra.mxu0 0.0
      %102 = vmatprep.subr.mxu0 0.0
      %103 = vmatpush1.msra.mxu0 0.0
      %104 = vmatprep.subr.mxu0 0.0
      %105 = vmatpush1.msra.mxu0 0.0
      %106 = vmatprep.subr.mxu0 0.0
      %107 = vmatpush1.msra.mxu0 %v66
      %108 = vmatprep.subr.mxu0 0.0
      %109 = vmatpush1.msra.mxu0 %v65
      %110 = vmatprep.subr.mxu0 0.0
      %111 = vmatpush2.msra.mxu0 0.0
      %112 = vmatprep.subr.mxu0 0.0
      %113 = vmatpush2.msra.mxu0 0.0
      %114 = vmatprep.subr.mxu0 0.0
      %115 = vmatpush2.msra.mxu0 0.0
      %116 = vmatprep.subr.mxu0 0.0
      %117 = vmatpush2.msra.mxu0 0.0
      %118 = vmatprep.subr.mxu0 0.0
      %119 = vmatpush2.msra.mxu0 0.0
      %120 = vmatprep.subr.mxu0 0.0
      %121 = vmatpush2.msra.mxu0 0.0
      %122 = vmatprep.subr.mxu0 0.0
      %123 = vmatpush2.msra.mxu0 0.0
      %124 = vmatprep.subr.mxu0 0.0
      %125 = vmatpush2.msra.mxu0 0.0
      %126 = vmatprep.subr.mxu0 0.0
      %127 = vmatpush2.msra.mxu0 0.0
      %128 = vmatprep.subr.mxu0 0.0
      %129 = vmatpush2.msra.mxu0 0.0
      %130 = vmatprep.subr.mxu0 0.0
      %131 = vmatpush2.msra.mxu0 0.0
      %132 = vmatprep.subr.mxu0 0.0
      %133 = vmatpush2.msra.mxu0 0.0
      %134 = vmatprep.subr.mxu0 0.0
      %135 = vmatpush2.msra.mxu0 0.0
      %136 = vmatprep.subr.mxu0 0.0
      %137 = vmatpush2.msra.mxu0 0.0
      %138 = vmatprep.subr.mxu0 0.0
      %139 = vmatpush2.msra.mxu0 0.0
      %140 = vmatprep.subr.mxu0 0.0
      %141 = vmatpush2.msra.mxu0 0.0
      %142 = vmatprep.mubr.f32.mxu0 0.0
      %143 = vmatmul.mubr.f32.gmra.mxu0 %v76
      %v144 = vpop.f32.mrf.mxu0
      %v145 = vadd.f32 %v72, %v144
      %v146 = vpop.f32.mrf.mxu0
      %147 = vdwg.mxu0
      %v148 = vmax.f32 %v145, 0.0
      %149 = vst [vmem:[#allocation2] sm:$0xff] %v148
    $region37: #{tpu_custom_call.1} parent=1 // pred_fallthru
      _
    %v150 = vld [vmem:[#allocation2] sm:$0xff]
    %v151 = vld [vmem:[#allocation8] sm:$0xff]
    %v152 = vld [vmem:[#allocation8 + $0x8] sm:$0xff]
    %v153 = vld [vmem:[#allocation8 + $0x10] sm:$0xff]
    %v154 = vld [vmem:[#allocation8 + $0x18] sm:$0xff]
    %v155 = vld [vmem:[#allocation8 + $0x20] sm:$0xff]
    %v156 = vld [vmem:[#allocation8 + $0x28] sm:$0xff]
    %v157 = vld [vmem:[#allocation8 + $0x30] sm:$0xff]
    %v158 = vld [vmem:[#allocation8 + $0x38] sm:$0xff]
    %v159 = vld [vmem:[#allocation8 + $0x40] sm:$0xff]
    %v160 = vld [vmem:[#allocation8 + $0x48] sm:$0xff]
    %v161 = vld [vmem:[#allocation8 + $0x50] sm:$0xff]
    %v162 = vld [vmem:[#allocation8 + $0x58] sm:$0xff]
    %v163 = vld [vmem:[#allocation8 + $0x60] sm:$0xff]
    %v164 = vld [vmem:[#allocation8 + $0x68] sm:$0xff]
    %v165 = vld [vmem:[#allocation8 + $0x70] sm:$0xff]
    %v166 = vld [vmem:[#allocation8 + $0x78] sm:$0xff]
    %v167 = vld [vmem:[%s4] sm:$0x1]
    %v169 = vlaneseq
    %v170 = vshrl.u32 %v169, 7
    %v171 = vsub.s32 0, %v170
    %v172 = vrot.slane %v167, %v171
    %174 = vmatprep.subr.mxu0 0.0
    %175 = vmatpush1.msra.mxu0 %v166
    %176 = vmatprep.subr.mxu0 0.0
    %177 = vmatpush1.msra.mxu0 %v165
    %178 = vmatprep.subr.mxu0 0.0
    %179 = vmatpush1.msra.mxu0 %v164
    %180 = vmatprep.subr.mxu0 0.0
    %181 = vmatpush1.msra.mxu0 %v163
    %182 = vmatprep.subr.mxu0 0.0
    %183 = vmatpush1.msra.mxu0 %v162
    %184 = vmatprep.subr.mxu0 0.0
    %185 = vmatpush1.msra.mxu0 %v161
    %186 = vmatprep.subr.mxu0 0.0
    %187 = vmatpush1.msra.mxu0 %v160
    %188 = vmatprep.subr.mxu0 0.0
    %189 = vmatpush1.msra.mxu0 %v159
    %190 = vmatprep.subr.mxu0 0.0
    %191 = vmatpush1.msra.mxu0 %v158
    %192 = vmatprep.subr.mxu0 0.0
    %193 = vmatpush1.msra.mxu0 %v157
    %194 = vmatprep.subr.mxu0 0.0
    %195 = vmatpush1.msra.mxu0 %v156
    %196 = vmatprep.subr.mxu0 0.0
    %197 = vmatpush1.msra.mxu0 %v155
    %198 = vmatprep.subr.mxu0 0.0
    %199 = vmatpush1.msra.mxu0 %v154
    %200 = vmatprep.subr.mxu0 0.0
    %201 = vmatpush1.msra.mxu0 %v153
    %202 = vmatprep.subr.mxu0 0.0
    %203 = vmatpush1.msra.mxu0 %v152
    %204 = vmatprep.subr.mxu0 0.0
    %205 = vmatpush1.msra.mxu0 %v151
    %206 = vmatprep.subr.mxu0 0.0
    %207 = vmatpush2.msra.mxu0 0.0
    %208 = vmatprep.subr.mxu0 0.0
    %209 = vmatpush2.msra.mxu0 0.0
    %210 = vmatprep.subr.mxu0 0.0
    %211 = vmatpush2.msra.mxu0 0.0
    %212 = vmatprep.subr.mxu0 0.0
    %213 = vmatpush2.msra.mxu0 0.0
    %214 = vmatprep.subr.mxu0 0.0
    %215 = vmatpush2.msra.mxu0 0.0
    %216 = vmatprep.subr.mxu0 0.0
    %217 = vmatpush2.msra.mxu0 0.0
    %218 = vmatprep.subr.mxu0 0.0
    %219 = vmatpush2.msra.mxu0 0.0
    %220 = vmatprep.subr.mxu0 0.0
    %221 = vmatpush2.msra.mxu0 0.0
    %222 = vmatprep.subr.mxu0 0.0
    %223 = vmatpush2.msra.mxu0 0.0
    %224 = vmatprep.subr.mxu0 0.0
    %225 = vmatpush2.msra.mxu0 0.0
    %226 = vmatprep.subr.mxu0 0.0
    %227 = vmatpush2.msra.mxu0 0.0
    %228 = vmatprep.subr.mxu0 0.0
    %229 = vmatpush2.msra.mxu0 0.0
    %230 = vmatprep.subr.mxu0 0.0
    %231 = vmatpush2.msra.mxu0 0.0
    %232 = vmatprep.subr.mxu0 0.0
    %233 = vmatpush2.msra.mxu0 0.0
    %234 = vmatprep.subr.mxu0 0.0
    %235 = vmatpush2.msra.mxu0 0.0
    %236 = vmatprep.subr.mxu0 0.0
    %237 = vmatpush2.msra.mxu0 0.0
    %238 = vmatprep.mubr.f32.mxu0 0.0
    %239 = vmatmul.mubr.f32.gmra.mxu0 %v150
    %v240 = vpop.f32.mrf.mxu0
    %v241 = vadd.f32 %v172, %v240
    %v242 = vpop.f32.mrf.mxu0
    %243 = vdwg.mxu0
    %244 = vst [vmem:[#allocation9] sm:$0xff] %v241
    // Predicated region
    $region38: #{tpu_custom_call.1} parent=1 // pred_check
      _
    $region39: #{tpu_custom_call.1} parent=1 // pred_check_branch
      %246 = sbr.rel (0) target = $region41
    $region40: #{tpu_custom_call.1} parent=1 // pred_region
      %s248 = ssub.s32 128, 128
      %249 = vsyncadd [#allocation5], %s248
      %s251 = sshll.u32 [#allocation9], 4
      %s252 = int_to_ptr.vmem [resolvable:$true] %s251
      %254 = dma.vmem_to_hbm [thread:$0]  %s252, 128, %s5, [#allocation5]
    $region41: #{tpu_custom_call.1} parent=1 // pred_fallthru
      _
    // Predicated region
    $region42: #{tpu_custom_call.1} parent=1 // pred_check
      _
    $region43: #{tpu_custom_call.1} parent=1 // pred_check_branch
      %256 = sbr.rel (0) target = $region45
    $region44: #{tpu_custom_call.1} parent=1 // pred_region
      %257 = dma.done [#allocation5], 128
    $region45: #{tpu_custom_call.1} parent=1 // pred_fallthru
      _
    %258 = vsyncpa [#allocation4], 1
    %259 = vsyncpa [#allocation7], 1
    %260 = vsyncpa [#allocation5], 1

</llo_original>
